<compile_context>
chip_gen: v6e
topology: v6e:2x2x1
jax: 0.10.0
libtpu: 0.0.40
codegen_flags: <defaults>
</compile_context>

<pallas_src>
import numpy as np
import jax
import jax.numpy as jnp
from jax import lax
from jax.experimental import pallas as pl
from jax.experimental.pallas import tpu as pltpu


# -----------------------------------------------------------------------------
# Pallas kernel: conv-as-matmul + separable 3x3 window max, n_imgs images / step
# -----------------------------------------------------------------------------
def _make_tokenizer_kernel(n_imgs, hc, wc, hp, cp):
    hw = hc * wc
    m = n_imgs * hw          # conv rows per grid step (batch folded into M)
    n2 = n_imgs * hp * wc    # even-h rows per grid step
    neg = float(jnp.finfo(jnp.float32).min)

    def kernel(patches_ref, w_ref, out_ref):
        # patches_ref : (m, K)               bf16 im2col patches (K unpadded, e.g. 36)
        # w_ref       : (K, cp)              bf16 conv weight (Cout zero-padded to 128)
        # out_ref     : (n_imgs, hp, wc, cp) f32  even-h rows of the 3x3 window max

        # ---- Convolution (activation = Identity): one MXU matmul, f32 accum ----
        conv = jnp.dot(patches_ref[...], w_ref[...],
                       preferred_element_type=jnp.float32)            # (m, cp)

        # Rows are (img, h, w)-major.  Boundary masks are (rows, 1) iota columns;
        # the selects lane-broadcast them for free.
        w_col = lax.broadcasted_iota(jnp.int32, (n_imgs, hc, wc, 1), 2).reshape(m, 1)

        # ---- MaxPool2d W direction: 3-tap max via XLU rolls of +-1 row --------
        # roll wraps, so rows at w == 0 / w == wc-1 take -inf instead of the
        # wrapped-in neighbour (also kills any cross-image leak).
        left = jnp.where(w_col == 0, neg, pltpu.roll(conv, shift=1, axis=0))
        right = jnp.where(w_col == wc - 1, neg, pltpu.roll(conv, shift=m - 1, axis=0))
        wmax = jnp.maximum(conv, jnp.maximum(left, right))             # (m, cp)

        # ---- MaxPool2d H direction, computed only at even h (the kept rows) ---
        # h = 2*h_out and h = 2*h_out + 1 are the two contiguous sublane halves
        # of each 2*wc row group; h = 2*h_out - 1 is the previous group's odd
        # half (roll by wc rows), -inf at h_out == 0 (top padding / image edge).
        wmax_r = wmax.reshape(n_imgs * hp, 2 * wc, cp)
        even = wmax_r[:, :wc, :].reshape(n2, cp)        # h = 2*h_out
        odd = wmax_r[:, wc:, :].reshape(n2, cp)         # h = 2*h_out + 1
        h_col = lax.broadcasted_iota(jnp.int32, (n_imgs, hp, wc, 1), 1).reshape(n2, 1)
        prev_odd = jnp.where(h_col == 0, neg,
                             pltpu.roll(odd, shift=wc, axis=0))        # h = 2*h_out - 1
        pooled = jnp.maximum(even, jnp.maximum(odd, prev_odd))         # (n2, cp)

        out_ref[...] = pooled.reshape(n_imgs, hp, wc, cp).astype(out_ref.dtype)

    return kernel


# -----------------------------------------------------------------------------
# Wrapper / glue
# -----------------------------------------------------------------------------
def _pick_images_per_step(b, hw, max_rows=2048):
    """Largest divisor of b keeping the M-tile <= max_rows (VMEM cap, v7x has
    only 64 MiB) and, when possible, at least 2 grid steps (v7x: 2 TensorCores)."""
    best = 1
    for d in range(1, b + 1):
        if b % d:
            continue
        if d * hw > max_rows:
            break
        if b >= 2 and b // d < 2:
            continue
        best = d
    return best


def tokenizer_forward(x_nchw, weight_oihw, *, kernel_size, stride, padding,
                      pooling_kernel_size=3, pooling_stride=2, pooling_padding=1):
    """Pallas implementation of Tokenizer.forward.

    x_nchw      : (B, Cin, H, W) float32
    weight_oihw : (Cout, Cin, KH, KW) float32
    returns     : (B, seq_len, Cout) float32
    """
    b, cin, h, w = x_nchw.shape
    cout, _, kh, kw = weight_oihw.shape
    assert kh == kernel_size and kw == kernel_size
    # In-kernel window max / decimation implements the Tokenizer default pool.
    assert (pooling_kernel_size, pooling_stride, pooling_padding) == (3, 2, 1)
    # TODO(synk): generalize the in-kernel pooling to other MaxPool2d configs.

    hc = (h + 2 * padding - kernel_size) // stride + 1
    wc = (w + 2 * padding - kernel_size) // stride + 1
    hp = (hc + 2 * pooling_padding - pooling_kernel_size) // pooling_stride + 1
    wp = (wc + 2 * pooling_padding - pooling_kernel_size) // pooling_stride + 1
    assert hc % 2 == 0 and hp == hc // 2, "even-h in-kernel pooling needs even conv height"
    assert wc % 8 == 0, "in-kernel sublane reshapes/slices need conv width % 8 == 0"

    hw = hc * wc
    k2c = kernel_size * kernel_size * cin
    cp = max(128, ((cout + 127) // 128) * 128)     # lane-dense output channels

    imgs_per_step = _pick_images_per_step(b, hw)
    n_steps = b // imgs_per_step
    m = imgs_per_step * hw

    # --- glue: NCHW -> NHWC, zero-pad, im2col (H-major patch rows), no K pad ---
    # TODO(synk): for large H*W move im2col into the kernel to avoid the 9x patch
    # inflation in HBM; at 16x16 it is negligible.
    x_nhwc = jnp.transpose(x_nchw, (0, 2, 3, 1)).astype(jnp.float32)
    x_pad = jnp.pad(x_nhwc, ((0, 0), (padding, padding), (padding, padding), (0, 0)))
    taps = []
    for dkh in range(kernel_size):
        for dkw in range(kernel_size):
            taps.append(x_pad[:,
                              dkh:dkh + stride * hc:stride,
                              dkw:dkw + stride * wc:stride, :])        # (B, hc, wc, Cin)
    patches = jnp.stack(taps, axis=3).reshape(b * hw, k2c)             # (B*HW, K), K unpadded
    patches = patches.astype(jnp.bfloat16)                             # MXU-native input

    # Conv weight OIHW -> (KH, KW, Cin, Cout) -> (K, Cout), Cout zero-padded to 128.
    w_flat = jnp.transpose(weight_oihw, (2, 3, 1, 0)).reshape(k2c, cout)
    w_flat = jnp.pad(w_flat, ((0, 0), (0, cp - cout))).astype(jnp.bfloat16)

    kernel = _make_tokenizer_kernel(imgs_per_step, hc, wc, hp, cp)
    grid_spec = pltpu.PrefetchScalarGridSpec(
        num_scalar_prefetch=0,
        grid=(n_steps,),
        in_specs=[
            # (m, K): last dim equals the full array dim, second-to-last % 8 == 0.
            pl.BlockSpec((m, k2c), lambda i: (i, 0)),
            # Grid-invariant weight (constant index_map -> not re-DMA'd per step).
            pl.BlockSpec((k2c, cp), lambda i: (0, 0)),
        ],
        out_specs=pl.BlockSpec((imgs_per_step, hp, wc, cp), lambda i: (i, 0, 0, 0)),
    )
    out_full = pl.pallas_call(
        kernel,
        out_shape=jax.ShapeDtypeStruct((b, hp, wc, cp), jnp.float32),
        grid_spec=grid_spec,
        compiler_params=pltpu.CompilerParams(dimension_semantics=("parallel",)),
    )(patches, w_flat)

    # Pure selection (no compute): even-w stride-2 decimation and slice of the
    # zero-padded channels, then flatten spatial -> (B, seq_len, Cout).  Kept
    # outside the kernel so every in-kernel store stays (8,128)-aligned.
    tokens = out_full[:, :, 0:2 * wp:2, :cout]                         # (B, Hp, Wp, Cout)
    return tokens.reshape(b, hp * wp, cout)


# -----------------------------------------------------------------------------
# Pure-JAX reference (for correctness checking only)
# -----------------------------------------------------------------------------
def tokenizer_reference(x_nchw, weight_oihw, *, stride, padding,
                        pooling_kernel_size=3, pooling_stride=2, pooling_padding=1):
    conv = lax.conv_general_dilated(
        x_nchw, weight_oihw,
        window_strides=(stride, stride),
        padding=[(padding, padding), (padding, padding)],
        dimension_numbers=("NCHW", "OIHW", "NCHW"),
        precision=lax.Precision.HIGHEST)
    pooled = lax.reduce_window(
        conv, -jnp.inf, lax.max,
        window_dimensions=(1, 1, pooling_kernel_size, pooling_kernel_size),
        window_strides=(1, 1, pooling_stride, pooling_stride),
        padding=[(0, 0), (0, 0),
                 (pooling_padding, pooling_padding),
                 (pooling_padding, pooling_padding)])
    bsz, cout = pooled.shape[0], pooled.shape[1]
    return jnp.transpose(pooled.reshape(bsz, cout, -1), (0, 2, 1))


# -----------------------------------------------------------------------------
# Main
# -----------------------------------------------------------------------------
if __name__ == "__main__":
    # Module hyper-params (small, consistent with the Tokenizer constructor).
    kernel_size, stride, padding = 3, 1, 1
    n_input_channels, n_output_channels = 4, 32
    B, H, W = 2, 16, 16

    key = jax.random.PRNGKey(0)
    kx, kw_ = jax.random.split(key)

    # Input (NCHW, like PyTorch).
    x = jax.random.normal(kx, (B, n_input_channels, H, W), dtype=jnp.float32)

    # Conv2d weight (OIHW), kaiming_normal-style init (std = sqrt(2 / fan_in)), bias=False.
    fan_in = n_input_channels * kernel_size * kernel_size
    weight = jax.random.normal(
        kw_, (n_output_channels, n_input_channels, kernel_size, kernel_size),
        dtype=jnp.float32) * np.sqrt(2.0 / fan_in)

    out = tokenizer_forward(x, weight,
                            kernel_size=kernel_size, stride=stride, padding=padding)
    out = jax.block_until_ready(out)

    # Reference at matching precision (kernel uses bf16 matmul inputs, f32 accum),
    # so the assert is tight and non-flaky.
    x_m = x.astype(jnp.bfloat16).astype(jnp.float32)
    w_m = weight.astype(jnp.bfloat16).astype(jnp.float32)
    ref = tokenizer_reference(x_m, w_m, stride=stride, padding=padding)

    assert out.shape == ref.shape == (B, 8 * 8, n_output_channels), out.shape
    np.testing.assert_allclose(np.asarray(out), np.asarray(ref), rtol=1e-2, atol=1e-2)

    print("KERNEL_OK")
</pallas_src>

<mosaic_0001>
module attributes {stable_mosaic.version = 11 : i64} {
  func.func @kernel(%arg0: i32, %arg1: memref<256x36xbf16, #tpu.memory_space<vmem>>, %arg2: memref<36x128xbf16, #tpu.memory_space<vmem>>, %arg3: memref<1x8x16x128xf32, #tpu.memory_space<vmem>>) attributes {dimension_semantics = [#tpu.dimension_semantics<parallel>], iteration_bounds = array<i64: 2>, scalar_prefetch = 0 : i64, scratch_operands = 0 : i64, tpu.core_type = #tpu.core_type<tc>, window_params = [{transform_indices = @transform_0, window_bounds = array<i64: 256, 36>}, {pipeline_mode = #tpu.pipeline_mode<synchronous>, transform_indices = @transform_1, window_bounds = array<i64: 36, 128>}, {transform_indices = @transform_2, window_bounds = array<i64: 1, 8, 16, 128>}]} {
    %c0 = arith.constant 0 : index
    %c0_0 = arith.constant 0 : index
    %0 = vector.load %arg1[%c0, %c0_0] : memref<256x36xbf16, #tpu.memory_space<vmem>>, vector<256x36xbf16>
    %c0_1 = arith.constant 0 : index
    %c0_2 = arith.constant 0 : index
    %1 = vector.load %arg2[%c0_1, %c0_2] : memref<36x128xbf16, #tpu.memory_space<vmem>>, vector<36x128xbf16>
    %cst = arith.constant dense<0.000000e+00> : vector<256x128xf32>
    %2 = tpu.matmul %0, %1, %cst {dimension_numbers = #tpu.dot_dimension_numbers<[1], [0], [0], [1], [0, 0, 1, 1], [], []>} : vector<256x36xbf16>, vector<36x128xbf16>, vector<256x128xf32> -> vector<256x128xf32>
    %3 = tpu.iota {dimensions = array<i32: 2>} : vector<1x16x16x1xi32>
    %4 = vector.shape_cast %3 : vector<1x16x16x1xi32> to vector<256x1xi32>
    %c0_i32 = arith.constant 0 : i32
    %5 = vector.broadcast %c0_i32 : i32 to vector<256x1xi32>
    %6 = arith.cmpi eq, %4, %5 : vector<256x1xi32>
    %c1_i32 = arith.constant 1 : i32
    %7 = tpu.dynamic_rotate %2 by %c1_i32 dim 0 : vector<256x128xf32>, i32 -> vector<256x128xf32>
    %cst_3 = arith.constant -3.40282347E+38 : f32
    %8 = vector.shape_cast %6 : vector<256x1xi1> to vector<256x1xi1>
    %9 = vector.broadcast %8 : vector<256x1xi1> to vector<256x128xi1>
    %10 = vector.broadcast %cst_3 : f32 to vector<256x128xf32>
    %11 = arith.select %9, %10, %7 : vector<256x128xi1>, vector<256x128xf32>
    %c15_i32 = arith.constant 15 : i32
    %12 = vector.broadcast %c15_i32 : i32 to vector<256x1xi32>
    %13 = arith.cmpi eq, %4, %12 : vector<256x1xi32>
    %c255_i32 = arith.constant 255 : i32
    %14 = tpu.dynamic_rotate %2 by %c255_i32 dim 0 : vector<256x128xf32>, i32 -> vector<256x128xf32>
    %cst_4 = arith.constant -3.40282347E+38 : f32
    %15 = vector.shape_cast %13 : vector<256x1xi1> to vector<256x1xi1>
    %16 = vector.broadcast %15 : vector<256x1xi1> to vector<256x128xi1>
    %17 = vector.broadcast %cst_4 : f32 to vector<256x128xf32>
    %18 = arith.select %16, %17, %14 : vector<256x128xi1>, vector<256x128xf32>
    %19 = arith.maximumf %11, %18 : vector<256x128xf32>
    %20 = arith.maximumf %2, %19 : vector<256x128xf32>
    %21 = vector.shape_cast %20 : vector<256x128xf32> to vector<8x32x128xf32>
    %22 = vector.extract_strided_slice %21 {offsets = [0, 0, 0], sizes = [8, 16, 128], strides = [1, 1, 1]} : vector<8x32x128xf32> to vector<8x16x128xf32>
    %23 = vector.shape_cast %22 : vector<8x16x128xf32> to vector<128x128xf32>
    %24 = vector.extract_strided_slice %21 {offsets = [0, 16, 0], sizes = [8, 16, 128], strides = [1, 1, 1]} : vector<8x32x128xf32> to vector<8x16x128xf32>
    %25 = vector.shape_cast %24 : vector<8x16x128xf32> to vector<128x128xf32>
    %26 = tpu.iota {dimensions = array<i32: 1>} : vector<1x8x16x1xi32>
    %27 = vector.shape_cast %26 : vector<1x8x16x1xi32> to vector<128x1xi32>
    %c0_i32_5 = arith.constant 0 : i32
    %28 = vector.broadcast %c0_i32_5 : i32 to vector<128x1xi32>
    %29 = arith.cmpi eq, %27, %28 : vector<128x1xi32>
    %c16_i32 = arith.constant 16 : i32
    %30 = tpu.dynamic_rotate %25 by %c16_i32 dim 0 : vector<128x128xf32>, i32 -> vector<128x128xf32>
    %cst_6 = arith.constant -3.40282347E+38 : f32
    %31 = vector.shape_cast %29 : vector<128x1xi1> to vector<128x1xi1>
    %32 = vector.broadcast %31 : vector<128x1xi1> to vector<128x128xi1>
    %33 = vector.broadcast %cst_6 : f32 to vector<128x128xf32>
    %34 = arith.select %32, %33, %30 : vector<128x128xi1>, vector<128x128xf32>
    %35 = arith.maximumf %25, %34 : vector<128x128xf32>
    %36 = arith.maximumf %23, %35 : vector<128x128xf32>
    %37 = vector.shape_cast %36 : vector<128x128xf32> to vector<1x8x16x128xf32>
    %c0_7 = arith.constant 0 : index
    %c0_8 = arith.constant 0 : index
    %c0_9 = arith.constant 0 : index
    %c0_10 = arith.constant 0 : index
    %38 = vector.load %arg3[%c0_7, %c0_8, %c0_9, %c0_10] : memref<1x8x16x128xf32, #tpu.memory_space<vmem>>, vector<1x8x16x128xf32>
    tpu.vector_store %arg3[%c0_7, %c0_8, %c0_9, %c0_10], %37 {strides = array<i32>} : memref<1x8x16x128xf32, #tpu.memory_space<vmem>>, vector<1x8x16x128xf32>,
    return
  }
  func.func @transform_0(%arg0: i32) -> (i32, i32) {
    %c0_i32 = arith.constant 0 : i32
    %c0_i32_0 = arith.constant 0 : i32
    return %arg0, %c0_i32 : i32, i32
  }
  func.func @transform_1(%arg0: i32) -> (i32, i32) {
    %c0_i32 = arith.constant 0 : i32
    %c0_i32_0 = arith.constant 0 : i32
    %c0_i32_1 = arith.constant 0 : i32
    return %c0_i32, %c0_i32_0 : i32, i32
  }
  func.func @transform_2(%arg0: i32) -> (i32, i32, i32, i32) {
    %c0_i32 = arith.constant 0 : i32
    %c0_i32_0 = arith.constant 0 : i32
    %c0_i32_1 = arith.constant 0 : i32
    %c0_i32_2 = arith.constant 0 : i32
    return %arg0, %c0_i32, %c0_i32_0, %c0_i32_1 : i32, i32, i32, i32
  }
}

</mosaic_0001>

<llo_original>
// kernel: tpu_custom_call.1
$region0: #{tpu_custom_call.1}
  #allocation0 [shape = 'u32[]', space=smem, size = 0x4, offset = 0x4, fixed_abs, tag = 'smem constant byte address 0x4 - core index']
  #allocation1 [shape = 'u32[144,128]{1,0:T(1,128)}', space=vmem, size = 0x12000, scoped, tag = 'internal scratch']
  %s0 = inlined_call_operand.vmem [shape: bf16[512,36], index: 0, kind: input, shape index: {}]
  %s1 = inlined_call_operand.vmem [shape: bf16[36,128], index: 1, kind: input, shape index: {}]
  %s2 = inlined_call_operand.hbm [shape: f32[2,8,16,128], index: 2, kind: output, shape index: {}]
  %s3 = sld [smem:[#allocation0]]
  $region41: #{tpu_custom_call.1} parent=0
    _
  %s5 = ssub.s32 1, %s3
  %s6 = scalar_select 0, %s5, %s3
  $region1: #{tpu_custom_call.1} parent=0
    #allocation2 [shape = 'u8[131072]{0}', space=vmem, size = 0x20000, scoped, tag = 'output window, operand 0']
    #allocation3 [shape = 's32[2]{0}', space=sflag, size = 0x8, scoped, tag = 'scoped memory for tpu_custom_call.1']
    %7 = vsyncpa [#allocation3], 0
    %s8 = scalar_lea.sflag [#allocation3], 1
    %9 = vsyncpa %s8, 0
    loop: start=0, step=1, limit=4
    $region2: #{tpu_custom_call.1} parent=1 // loop_pre_header
      _
    $region3: #{tpu_custom_call.1} parent=1 // loop_header
      %s11 = sphi 0, %s15
      %p12 = scmp.ge.s32.totalorder %s11, 4
      %s21 = sphi 0, %s23
      %s24 = sphi 0, %s21
      %s25 = sphi 0, %s24
      %s41 = sphi 0, %s25
      %s45 = sphi 0, %s45
      %s47 = sphi 0, %s45
      %s48 = sphi 0, %s47
      %s62 = sphi 0, %s48
      %s68 = sphi 0, %s70
      %s71 = sphi 0, %s68
      %s72 = sphi 0, %s71
      %s88 = sphi 0, %s72
    $region4: #{tpu_custom_call.1} parent=1 // loop_header_branch
      %14 = sbr.rel (%p12) target = $region8
    $region5: #{tpu_custom_call.1} parent=1 // loop_body
      %s16 = ssub.s32 %s11, 1
      %s17 = ssub.s32 %s11, 2
      %s18 = sadd.s32 %s11, 1
      %s19 = ssub.s32 %s11, %s18
      %p20 = scmp.eq.s32.totalorder %s19, 0
      %s22 = sadd.s32 %s21, 1
      %s23 = scalar_select %p20, %s21, %s22
      %p26 = pneg %p20
      %p27 = scmp.eq.s32.totalorder %s11, 1
      %p28 = por %p26, %p27
      %p29 = scmp.ne.s32.totalorder %s21, %s24
      %p30 = scmp.eq.s32.totalorder %s11, 0
      %p31 = por %p29, %p30
      %p32 = scmp.ne.s32.totalorder %s21, %s24
      %p33 = scmp.eq.s32.totalorder %s16, 1
      %p34 = por %p32, %p33
      %p35 = scmp.ne.s32.totalorder %s24, %s25
      %p36 = scmp.eq.s32.totalorder %s16, 0
      %p37 = por %p35, %p36
      %p38 = scmp.ne.s32.totalorder %s24, %s25
      %p39 = scmp.eq.s32.totalorder %s17, 1
      %p40 = por %p38, %p39
      %p42 = scmp.ne.s32.totalorder %s25, %s41
      %p43 = scmp.eq.s32.totalorder %s17, 0
      %p44 = por %p42, %p43
      %s46 = sadd.s32 %s45, 1
      %p49 = scmp.eq.s32.totalorder %s11, 1
      %p50 = scmp.ne.s32.totalorder %s45, %s47
      %p51 = scmp.eq.s32.totalorder %s11, 0
      %p52 = por %p50, %p51
      %p53 = scmp.ne.s32.totalorder %s45, %s47
      %p54 = scmp.eq.s32.totalorder %s16, 1
      %p55 = por %p53, %p54
      %p56 = scmp.ne.s32.totalorder %s47, %s48
      %p57 = scmp.eq.s32.totalorder %s16, 0
      %p58 = por %p56, %p57
      %p59 = scmp.ne.s32.totalorder %s47, %s48
      %p60 = scmp.eq.s32.totalorder %s17, 1
      %p61 = por %p59, %p60
      %p63 = scmp.ne.s32.totalorder %s48, %s62
      %p64 = scmp.eq.s32.totalorder %s17, 0
      %p65 = por %p63, %p64
      %s66 = ssub.s32 %s11, %s18
      %p67 = scmp.eq.s32.totalorder %s66, 0
      %s69 = sadd.s32 %s68, 1
      %s70 = scalar_select %p67, %s68, %s69
      %p73 = pneg %p67
      %p74 = scmp.eq.s32.totalorder %s11, 1
      %p75 = por %p73, %p74
      %p76 = scmp.ne.s32.totalorder %s68, %s71
      %p77 = scmp.eq.s32.totalorder %s11, 0
      %p78 = por %p76, %p77
      %p79 = scmp.ne.s32.totalorder %s68, %s71
      %p80 = scmp.eq.s32.totalorder %s16, 1
      %p81 = por %p79, %p80
      %p82 = scmp.ne.s32.totalorder %s71, %s72
      %p83 = scmp.eq.s32.totalorder %s16, 0
      %p84 = por %p82, %p83
      %p85 = scmp.ne.s32.totalorder %s71, %s72
      %p86 = scmp.eq.s32.totalorder %s17, 1
      %p87 = por %p85, %p86
      %p89 = scmp.ne.s32.totalorder %s72, %s88
      %p90 = scmp.eq.s32.totalorder %s17, 0
      %p91 = por %p89, %p90
      %p92 = scmp.le.s32.totalorder 1, %s11
      %p93 = scmp.lt.s32.totalorder %s11, 3
      %p94 = pnand %p92, %p93
      %p95 = pneg %p94
      // Predicated region
      $region9: #{tpu_custom_call.1} parent=5 // pred_check
        _
      $region10: #{tpu_custom_call.1} parent=5 // pred_check_branch
        %97 = sbr.rel (%p94) target = $region12
      $region11: #{tpu_custom_call.1} parent=5 // pred_region
        %s98 = ssub.s32 %s11, 1
        // Predicated region
        $region13: #{tpu_custom_call.1} parent=11 // pred_check
          %p99 = pneg %p58
        $region14: #{tpu_custom_call.1} parent=11 // pred_check_branch
          %101 = sbr.rel (%p99) target = $region16
        $region15: #{tpu_custom_call.1} parent=11 // pred_region
          _
        $region16: #{tpu_custom_call.1} parent=11 // pred_fallthru
          _
      $region12: #{tpu_custom_call.1} parent=5 // pred_fallthru
        _
      %p102 = scmp.lt.s32.totalorder %s11, 2
      // Predicated region
      $region17: #{tpu_custom_call.1} parent=5 // pred_check
        %p103 = pneg %p102
      $region18: #{tpu_custom_call.1} parent=5 // pred_check_branch
        %105 = sbr.rel (%p103) target = $region20
      $region19: #{tpu_custom_call.1} parent=5 // pred_region
        // Predicated region
        $region21: #{tpu_custom_call.1} parent=19 // pred_check
          %p106 = pneg %p31
        $region22: #{tpu_custom_call.1} parent=19 // pred_check_branch
          %108 = sbr.rel (%p106) target = $region24
        $region23: #{tpu_custom_call.1} parent=19 // pred_region
          %s109 = smul.u32 32, %s11
          %p110 = scmp.lt.s32.totalorder %s109, 63
          %s111 = scalar_select %p110, %s109, 63
          %s112 = smul.addr %s111, 4
          %s113 = scalar_lea.vmem %s0, %s112
          %s114 = smul.u32 32, %s11
        $region24: #{tpu_custom_call.1} parent=19 // pred_fallthru
          _
      $region20: #{tpu_custom_call.1} parent=5 // pred_fallthru
        _
      %p115 = scmp.le.s32.totalorder 1, %s11
      %p116 = scmp.lt.s32.totalorder %s11, 3
      %p117 = pnand %p115, %p116
      %p118 = pneg %p117
      // Predicated region
      $region25: #{tpu_custom_call.1} parent=5 // pred_check
        _
      $region26: #{tpu_custom_call.1} parent=5 // pred_check_branch
        %120 = sbr.rel (%p117) target = $region28
      $region27: #{tpu_custom_call.1} parent=5 // pred_region
        %s121 = ssub.s32 %s11, 1
        %s122 = smul.u32 32, %s16
        %p123 = scmp.lt.s32.totalorder %s122, 63
        %s124 = scalar_select %p123, %s122, 63
        %s125 = smul.addr %s124, 4
        %s126 = scalar_lea.vmem %s0, %s125
        %p127 = pneg %p37
        %p128 = pneg %p34
        %p129 = pneg %p58
        %p130 = pneg %p55
        %p131 = pneg %p84
        %p132 = pneg %p81
        %s133 = sand.u32 %s71, 1
        %s134 = scalar_lea.sflag [#allocation3], %s133
        %s135 = sand.u32 %s71, 1
        %s136 = smul.addr %s135, 128
        %s137 = scalar_lea.vmem [#allocation2], %s136
        %s138 = smul.u32 32, %s16
        %p139 = scmp.lt.s32.totalorder %s138, 63
        %s140 = scalar_select %p139, %s138, 63
        %s141 = smul.addr %s140, 4
        %s142 = scalar_lea.vmem %s0, %s141
        %s143 = smul.u32 32, %s16
        %v145 = vld [vmem:[%s142] sm:$0xf]
        %v146 = vld [vmem:[%s142 + $0x4] sm:$0xf]
        %v147 = vld [vmem:[%s142 + $0x8] sm:$0xf]
        %v148 = vld [vmem:[%s142 + $0xc] sm:$0xf]
        %v149 = vld [vmem:[%s142 + $0x10] sm:$0xf]
        %v150 = vld [vmem:[%s142 + $0x14] sm:$0xf]
        %v151 = vld [vmem:[%s142 + $0x18] sm:$0xf]
        %v152 = vld [vmem:[%s142 + $0x1c] sm:$0xf]
        %v153 = vld [vmem:[%s142 + $0x20] sm:$0xf]
        %v154 = vld [vmem:[%s142 + $0x24] sm:$0xf]
        %v155 = vld [vmem:[%s142 + $0x28] sm:$0xf]
        %v156 = vld [vmem:[%s142 + $0x2c] sm:$0xf]
        %v157 = vld [vmem:[%s142 + $0x30] sm:$0xf]
        %v158 = vld [vmem:[%s142 + $0x34] sm:$0xf]
        %v159 = vld [vmem:[%s142 + $0x38] sm:$0xf]
        %v160 = vld [vmem:[%s142 + $0x3c] sm:$0xf]
        %v161 = vld [vmem:[%s142 + $0x40] sm:$0xf]
        %v162 = vld [vmem:[%s142 + $0x44] sm:$0xf]
        %v163 = vld [vmem:[%s142 + $0x48] sm:$0xf]
        %v164 = vld [vmem:[%s142 + $0x4c] sm:$0xf]
        %v165 = vld [vmem:[%s142 + $0x50] sm:$0xf]
        %v166 = vld [vmem:[%s142 + $0x54] sm:$0xf]
        %v167 = vld [vmem:[%s142 + $0x58] sm:$0xf]
        %v168 = vld [vmem:[%s142 + $0x5c] sm:$0xf]
        %v169 = vld [vmem:[%s142 + $0x60] sm:$0xf]
        %v170 = vld [vmem:[%s142 + $0x64] sm:$0xf]
        %v171 = vld [vmem:[%s142 + $0x68] sm:$0xf]
        %v172 = vld [vmem:[%s142 + $0x6c] sm:$0xf]
        %v173 = vld [vmem:[%s142 + $0x70] sm:$0xf]
        %v174 = vld [vmem:[%s142 + $0x74] sm:$0xf]
        %v175 = vld [vmem:[%s142 + $0x78] sm:$0xf]
        %v176 = vld [vmem:[%s142 + $0x7c] sm:$0xf]
        %v177 = vld [vmem:[%s1] sm:$0xf]
        %v178 = vld [vmem:[%s1 + $0x4] sm:$0xf]
        %v179 = vld [vmem:[%s1 + $0x8] sm:$0xf]
        %v180 = vld [vmem:[%s1 + $0xc] sm:$0xf]
        %v181 = vld [vmem:[%s1 + $0x10] sm:$0x3]
        %v214 = vunpack.c.l.b16 %v145
        %v215 = vunpack.c.l.b16 %v146
        %v216 = vunpack.c.l.b16 %v147
        %v217 = vunpack.c.l.b16 %v148
        %v218 = vunpack.c.l.b16 %v149
        %v219 = vunpack.c.l.b16 %v150
        %v220 = vunpack.c.l.b16 %v151
        %v221 = vunpack.c.l.b16 %v152
        %v222 = vunpack.c.l.b16 %v153
        %v223 = vunpack.c.l.b16 %v154
        %v224 = vunpack.c.l.b16 %v155
        %v225 = vunpack.c.l.b16 %v156
        %v226 = vunpack.c.l.b16 %v157
        %v227 = vunpack.c.l.b16 %v158
        %v228 = vunpack.c.l.b16 %v159
        %v229 = vunpack.c.l.b16 %v160
        %v230 = vunpack.c.l.b16 %v161
        %v231 = vunpack.c.l.b16 %v162
        %v232 = vunpack.c.l.b16 %v163
        %v233 = vunpack.c.l.b16 %v164
        %v234 = vunpack.c.l.b16 %v165
        %v235 = vunpack.c.l.b16 %v166
        %v236 = vunpack.c.l.b16 %v167
        %v237 = vunpack.c.l.b16 %v168
        %v238 = vunpack.c.l.b16 %v169
        %v239 = vunpack.c.l.b16 %v170
        %v240 = vunpack.c.l.b16 %v171
        %v241 = vunpack.c.l.b16 %v172
        %v242 = vunpack.c.l.b16 %v173
        %v243 = vunpack.c.l.b16 %v174
        %v244 = vunpack.c.l.b16 %v175
        %v245 = vunpack.c.l.b16 %v176
        %v246 = vpack.c.b16 %v215, %v214
        %v247 = vpack.c.b16 %v217, %v216
        %v248 = vpack.c.b16 %v219, %v218
        %v249 = vpack.c.b16 %v221, %v220
        %v250 = vpack.c.b16 %v223, %v222
        %v251 = vpack.c.b16 %v225, %v224
        %v252 = vpack.c.b16 %v227, %v226
        %v253 = vpack.c.b16 %v229, %v228
        %v254 = vpack.c.b16 %v231, %v230
        %v255 = vpack.c.b16 %v233, %v232
        %v256 = vpack.c.b16 %v235, %v234
        %v257 = vpack.c.b16 %v237, %v236
        %v258 = vpack.c.b16 %v239, %v238
        %v259 = vpack.c.b16 %v241, %v240
        %v260 = vpack.c.b16 %v243, %v242
        %v261 = vpack.c.b16 %v245, %v244
        %v267 = vunpack.c.l.b16 %v177
        %v268 = vunpack.c.l.b16 %v178
        %v269 = vunpack.c.l.b16 %v179
        %v270 = vunpack.c.l.b16 %v180
        %v271 = vunpack.c.l.b16 %v181
        %v272 = vpack.c.b16 %v268, %v267
        %v273 = vpack.c.b16 %v270, %v269
        %v274 = vpack.c.b16 %v271, %v271
        %vm277 = vcmask 293888
        %v279 = vsel %vm277, %v246, 0
        %v282 = vsel %vm277, %v247, 0
        %v285 = vsel %vm277, %v248, 0
        %v288 = vsel %vm277, %v249, 0
        %v291 = vsel %vm277, %v250, 0
        %v294 = vsel %vm277, %v251, 0
        %v297 = vsel %vm277, %v252, 0
        %v300 = vsel %vm277, %v253, 0
        %v303 = vsel %vm277, %v254, 0
        %v306 = vsel %vm277, %v255, 0
        %v309 = vsel %vm277, %v256, 0
        %v312 = vsel %vm277, %v257, 0
        %v315 = vsel %vm277, %v258, 0
        %v318 = vsel %vm277, %v259, 0
        %v321 = vsel %vm277, %v260, 0
        %v324 = vsel %vm277, %v261, 0
        %vm326 = vcmask 1041408
        %v328 = vsel %vm326, %v274, 0
        %330 = vmatprep.subr.bf16.mxu0 0
        %331 = vmatpush1.bf16.msra.mxu0 0
        %332 = vmatprep.subr.bf16.mxu0 0
        %333 = vmatpush1.bf16.msra.mxu0 0
        %334 = vmatprep.subr.bf16.mxu0 0
        %335 = vmatpush1.bf16.msra.mxu0 0
        %336 = vmatprep.subr.bf16.mxu0 0
        %337 = vmatpush1.bf16.msra.mxu0 0
        %338 = vmatprep.subr.bf16.mxu0 0
        %339 = vmatpush1.bf16.msra.mxu0 0
        %340 = vmatprep.subr.bf16.mxu0 0
        %341 = vmatpush1.bf16.msra.mxu0 %v328
        %342 = vmatprep.subr.bf16.mxu0 0
        %343 = vmatpush1.bf16.msra.mxu0 %v273
        %344 = vmatprep.subr.bf16.mxu0 0
        %345 = vmatpush1.bf16.msra.mxu0 %v272
        %346 = vmatprep.subr.bf16.mxu0 0
        %347 = vmatpush2.bf16.msra.mxu0 0
        %348 = vmatprep.subr.bf16.mxu0 0
        %349 = vmatpush2.bf16.msra.mxu0 0
        %350 = vmatprep.subr.bf16.mxu0 0
        %351 = vmatpush2.bf16.msra.mxu0 0
        %352 = vmatprep.subr.bf16.mxu0 0
        %353 = vmatpush2.bf16.msra.mxu0 0
        %354 = vmatprep.subr.bf16.mxu0 0
        %355 = vmatpush2.bf16.msra.mxu0 0
        %356 = vmatprep.subr.bf16.mxu0 0
        %357 = vmatpush2.bf16.msra.mxu0 0
        %358 = vmatprep.subr.bf16.mxu0 0
        %359 = vmatpush2.bf16.msra.mxu0 0
        %360 = vmatprep.subr.bf16.mxu0 0
        %361 = vmatpush2.bf16.msra.mxu0 0
        %362 = vmatprep.mubr.bf16.mxu0 0
        %363 = vmatmul.mubr.bf16.gmra.mxu0 %v279
        %v364 = vpop.f32.mrf.mxu0
        %v365 = vadd.f32 0.0, %v364
        %v366 = vpop.f32.mrf.mxu0
        %v367 = vpop.f32.mrf.mxu0
        %v368 = vadd.f32 0.0, %v367
        %v369 = vpop.f32.mrf.mxu0
        %370 = vmatprep.mubr.bf16.mxu0 0
        %371 = vmatmul.mubr.bf16.gmra.mxu0 %v282
        %v372 = vpop.f32.mrf.mxu0
        %v373 = vadd.f32 0.0, %v372
        %v374 = vpop.f32.mrf.mxu0
        %v375 = vpop.f32.mrf.mxu0
        %v376 = vadd.f32 0.0, %v375
        %v377 = vpop.f32.mrf.mxu0
        %378 = vmatprep.mubr.bf16.mxu0 0
        %379 = vmatmul.mubr.bf16.gmra.mxu0 %v285
        %v380 = vpop.f32.mrf.mxu0
        %v381 = vadd.f32 0.0, %v380
        %v382 = vpop.f32.mrf.mxu0
        %v383 = vpop.f32.mrf.mxu0
        %v384 = vadd.f32 0.0, %v383
        %v385 = vpop.f32.mrf.mxu0
        %386 = vmatprep.mubr.bf16.mxu0 0
        %387 = vmatmul.mubr.bf16.gmra.mxu0 %v288
        %v388 = vpop.f32.mrf.mxu0
        %v389 = vadd.f32 0.0, %v388
        %v390 = vpop.f32.mrf.mxu0
        %v391 = vpop.f32.mrf.mxu0
        %v392 = vadd.f32 0.0, %v391
        %v393 = vpop.f32.mrf.mxu0
        %394 = vmatprep.mubr.bf16.mxu0 0
        %395 = vmatmul.mubr.bf16.gmra.mxu0 %v291
        %v396 = vpop.f32.mrf.mxu0
        %v397 = vadd.f32 0.0, %v396
        %v398 = vpop.f32.mrf.mxu0
        %v399 = vpop.f32.mrf.mxu0
        %v400 = vadd.f32 0.0, %v399
        %v401 = vpop.f32.mrf.mxu0
        %402 = vmatprep.mubr.bf16.mxu0 0
        %403 = vmatmul.mubr.bf16.gmra.mxu0 %v294
        %v404 = vpop.f32.mrf.mxu0
        %v405 = vadd.f32 0.0, %v404
        %v406 = vpop.f32.mrf.mxu0
        %v407 = vpop.f32.mrf.mxu0
        %v408 = vadd.f32 0.0, %v407
        %v409 = vpop.f32.mrf.mxu0
        %410 = vmatprep.mubr.bf16.mxu0 0
        %411 = vmatmul.mubr.bf16.gmra.mxu0 %v297
        %v412 = vpop.f32.mrf.mxu0
        %v413 = vadd.f32 0.0, %v412
        %v414 = vpop.f32.mrf.mxu0
        %v415 = vpop.f32.mrf.mxu0
        %v416 = vadd.f32 0.0, %v415
        %v417 = vpop.f32.mrf.mxu0
        %418 = vmatprep.mubr.bf16.mxu0 0
        %419 = vmatmul.mubr.bf16.gmra.mxu0 %v300
        %v420 = vpop.f32.mrf.mxu0
        %v421 = vadd.f32 0.0, %v420
        %v422 = vpop.f32.mrf.mxu0
        %v423 = vpop.f32.mrf.mxu0
        %v424 = vadd.f32 0.0, %v423
        %v425 = vpop.f32.mrf.mxu0
        %426 = vmatprep.mubr.bf16.mxu0 0
        %427 = vmatmul.mubr.bf16.gmra.mxu0 %v303
        %v428 = vpop.f32.mrf.mxu0
        %v429 = vadd.f32 0.0, %v428
        %v430 = vpop.f32.mrf.mxu0
        %v431 = vpop.f32.mrf.mxu0
        %v432 = vadd.f32 0.0, %v431
        %v433 = vpop.f32.mrf.mxu0
        %434 = vmatprep.mubr.bf16.mxu0 0
        %435 = vmatmul.mubr.bf16.gmra.mxu0 %v306
        %v436 = vpop.f32.mrf.mxu0
        %v437 = vadd.f32 0.0, %v436
        %v438 = vpop.f32.mrf.mxu0
        %v439 = vpop.f32.mrf.mxu0
        %v440 = vadd.f32 0.0, %v439
        %v441 = vpop.f32.mrf.mxu0
        %442 = vmatprep.mubr.bf16.mxu0 0
        %443 = vmatmul.mubr.bf16.gmra.mxu0 %v309
        %v444 = vpop.f32.mrf.mxu0
        %v445 = vadd.f32 0.0, %v444
        %v446 = vpop.f32.mrf.mxu0
        %v447 = vpop.f32.mrf.mxu0
        %v448 = vadd.f32 0.0, %v447
        %v449 = vpop.f32.mrf.mxu0
        %450 = vmatprep.mubr.bf16.mxu0 0
        %451 = vmatmul.mubr.bf16.gmra.mxu0 %v312
        %v452 = vpop.f32.mrf.mxu0
        %v453 = vadd.f32 0.0, %v452
        %v454 = vpop.f32.mrf.mxu0
        %v455 = vpop.f32.mrf.mxu0
        %v456 = vadd.f32 0.0, %v455
        %v457 = vpop.f32.mrf.mxu0
        %458 = vmatprep.mubr.bf16.mxu0 0
        %459 = vmatmul.mubr.bf16.gmra.mxu0 %v315
        %v460 = vpop.f32.mrf.mxu0
        %v461 = vadd.f32 0.0, %v460
        %v462 = vpop.f32.mrf.mxu0
        %v463 = vpop.f32.mrf.mxu0
        %v464 = vadd.f32 0.0, %v463
        %v465 = vpop.f32.mrf.mxu0
        %466 = vmatprep.mubr.bf16.mxu0 0
        %467 = vmatmul.mubr.bf16.gmra.mxu0 %v318
        %v468 = vpop.f32.mrf.mxu0
        %v469 = vadd.f32 0.0, %v468
        %v470 = vpop.f32.mrf.mxu0
        %v471 = vpop.f32.mrf.mxu0
        %v472 = vadd.f32 0.0, %v471
        %v473 = vpop.f32.mrf.mxu0
        %474 = vmatprep.mubr.bf16.mxu0 0
        %475 = vmatmul.mubr.bf16.gmra.mxu0 %v321
        %v476 = vpop.f32.mrf.mxu0
        %v477 = vadd.f32 0.0, %v476
        %v478 = vpop.f32.mrf.mxu0
        %v479 = vpop.f32.mrf.mxu0
        %v480 = vadd.f32 0.0, %v479
        %v481 = vpop.f32.mrf.mxu0
        %482 = vmatprep.mubr.bf16.mxu0 0
        %483 = vmatmul.mubr.bf16.gmra.mxu0 %v324
        %v484 = vpop.f32.mrf.mxu0
        %v485 = vadd.f32 0.0, %v484
        %v486 = vpop.f32.mrf.mxu0
        %v487 = vpop.f32.mrf.mxu0
        %v488 = vadd.f32 0.0, %v487
        %v489 = vpop.f32.mrf.mxu0
        %490 = vdwg.mxu0
        %v491 = vlaneseq
        %v492 = vshrl.u32 %v491, 7
        %v493 = vadd.s32 %v492, 8
        %vm494 = vcmp.eq.s32.totalorder %v492, 0
        %vm495 = vcmp.eq.s32.totalorder %v493, 0
        %v496 = vrot.slane %v365, 7
        %v497 = vrot.slane %v368, 7
        %v498 = vrot.slane %v373, 7
        %v499 = vrot.slane %v376, 7
        %v500 = vrot.slane %v381, 7
        %v501 = vrot.slane %v384, 7
        %v502 = vrot.slane %v389, 7
        %v503 = vrot.slane %v392, 7
        %v504 = vrot.slane %v397, 7
        %v505 = vrot.slane %v400, 7
        %v506 = vrot.slane %v405, 7
        %v507 = vrot.slane %v408, 7
        %v508 = vrot.slane %v413, 7
        %v509 = vrot.slane %v416, 7
        %v510 = vrot.slane %v421, 7
        %v511 = vrot.slane %v424, 7
        %v512 = vrot.slane %v429, 7
        %v513 = vrot.slane %v432, 7
        %v514 = vrot.slane %v437, 7
        %v515 = vrot.slane %v440, 7
        %v516 = vrot.slane %v445, 7
        %v517 = vrot.slane %v448, 7
        %v518 = vrot.slane %v453, 7
        %v519 = vrot.slane %v456, 7
        %v520 = vrot.slane %v461, 7
        %v521 = vrot.slane %v464, 7
        %v522 = vrot.slane %v469, 7
        %v523 = vrot.slane %v472, 7
        %v524 = vrot.slane %v477, 7
        %v525 = vrot.slane %v480, 7
        %v526 = vrot.slane %v485, 7
        %v527 = vrot.slane %v488, 7
        %vm528 = vcmp.lt.s32.totalorder %v492, 1
        %v529 = vsel %vm528, %v526, %v527
        %v530 = vsel %vm528, %v525, %v526
        %v531 = vsel %vm528, %v524, %v525
        %v532 = vsel %vm528, %v523, %v524
        %v533 = vsel %vm528, %v522, %v523
        %v534 = vsel %vm528, %v521, %v522
        %v535 = vsel %vm528, %v520, %v521
        %v536 = vsel %vm528, %v519, %v520
        %v537 = vsel %vm528, %v518, %v519
        %v538 = vsel %vm528, %v517, %v518
        %v539 = vsel %vm528, %v516, %v517
        %v540 = vsel %vm528, %v515, %v516
        %v541 = vsel %vm528, %v514, %v515
        %v542 = vsel %vm528, %v513, %v514
        %v543 = vsel %vm528, %v512, %v513
        %v544 = vsel %vm528, %v511, %v512
        %v545 = vsel %vm528, %v510, %v511
        %v546 = vsel %vm528, %v509, %v510
        %v547 = vsel %vm528, %v508, %v509
        %v548 = vsel %vm528, %v507, %v508
        %v549 = vsel %vm528, %v506, %v507
        %v550 = vsel %vm528, %v505, %v506
        %v551 = vsel %vm528, %v504, %v505
        %v552 = vsel %vm528, %v503, %v504
        %v553 = vsel %vm528, %v502, %v503
        %v554 = vsel %vm528, %v501, %v502
        %v555 = vsel %vm528, %v500, %v501
        %v556 = vsel %vm528, %v499, %v500
        %v557 = vsel %vm528, %v498, %v499
        %v558 = vsel %vm528, %v497, %v498
        %v559 = vsel %vm528, %v496, %v497
        %v560 = vsel %vm528, %v527, %v496
        %v561 = vsel %vm494, 1, 0
        %v562 = vsel %vm495, 1, 0
        %vm563 = vcmp.eq.s32.totalorder %v561, 1
        %vm564 = vcmp.eq.s32.totalorder %v562, 1
        %v565 = vsel %vm563, -3.4028235e+38, %v560
        %v566 = vsel %vm564, -3.4028235e+38, %v559
        %v567 = vsel %vm563, -3.4028235e+38, %v558
        %v568 = vsel %vm564, -3.4028235e+38, %v557
        %v569 = vsel %vm563, -3.4028235e+38, %v556
        %v570 = vsel %vm564, -3.4028235e+38, %v555
        %v571 = vsel %vm563, -3.4028235e+38, %v554
        %v572 = vsel %vm564, -3.4028235e+38, %v553
        %v573 = vsel %vm563, -3.4028235e+38, %v552
        %v574 = vsel %vm564, -3.4028235e+38, %v551
        %v575 = vsel %vm563, -3.4028235e+38, %v550
        %v576 = vsel %vm564, -3.4028235e+38, %v549
        %v577 = vsel %vm563, -3.4028235e+38, %v548
        %v578 = vsel %vm564, -3.4028235e+38, %v547
        %v579 = vsel %vm563, -3.4028235e+38, %v546
        %v580 = vsel %vm564, -3.4028235e+38, %v545
        %v581 = vsel %vm563, -3.4028235e+38, %v544
        %v582 = vsel %vm564, -3.4028235e+38, %v543
        %v583 = vsel %vm563, -3.4028235e+38, %v542
        %v584 = vsel %vm564, -3.4028235e+38, %v541
        %v585 = vsel %vm563, -3.4028235e+38, %v540
        %v586 = vsel %vm564, -3.4028235e+38, %v539
        %v587 = vsel %vm563, -3.4028235e+38, %v538
        %v588 = vsel %vm564, -3.4028235e+38, %v537
        %v589 = vsel %vm563, -3.4028235e+38, %v536
        %v590 = vsel %vm564, -3.4028235e+38, %v535
        %v591 = vsel %vm563, -3.4028235e+38, %v534
        %v592 = vsel %vm564, -3.4028235e+38, %v533
        %v593 = vsel %vm563, -3.4028235e+38, %v532
        %v594 = vsel %vm564, -3.4028235e+38, %v531
        %v595 = vsel %vm563, -3.4028235e+38, %v530
        %v596 = vsel %vm564, -3.4028235e+38, %v529
        %vm597 = vcmp.eq.s32.totalorder %v492, 15
        %vm598 = vcmp.eq.s32.totalorder %v493, 15
        %v599 = vrot.slane %v365, 1
        %v600 = vrot.slane %v368, 1
        %v601 = vrot.slane %v373, 1
        %v602 = vrot.slane %v376, 1
        %v603 = vrot.slane %v381, 1
        %v604 = vrot.slane %v384, 1
        %v605 = vrot.slane %v389, 1
        %v606 = vrot.slane %v392, 1
        %v607 = vrot.slane %v397, 1
        %v608 = vrot.slane %v400, 1
        %v609 = vrot.slane %v405, 1
        %v610 = vrot.slane %v408, 1
        %v611 = vrot.slane %v413, 1
        %v612 = vrot.slane %v416, 1
        %v613 = vrot.slane %v421, 1
        %v614 = vrot.slane %v424, 1
        %v615 = vrot.slane %v429, 1
        %v616 = vrot.slane %v432, 1
        %v617 = vrot.slane %v437, 1
        %v618 = vrot.slane %v440, 1
        %v619 = vrot.slane %v445, 1
        %v620 = vrot.slane %v448, 1
        %v621 = vrot.slane %v453, 1
        %v622 = vrot.slane %v456, 1
        %v623 = vrot.slane %v461, 1
        %v624 = vrot.slane %v464, 1
        %v625 = vrot.slane %v469, 1
        %v626 = vrot.slane %v472, 1
        %v627 = vrot.slane %v477, 1
        %v628 = vrot.slane %v480, 1
        %v629 = vrot.slane %v485, 1
        %v630 = vrot.slane %v488, 1
        %vm631 = vcmp.lt.s32.totalorder %v492, 7
        %v632 = vsel %vm631, %v629, %v630
        %v633 = vsel %vm631, %v628, %v629
        %v634 = vsel %vm631, %v627, %v628
        %v635 = vsel %vm631, %v626, %v627
        %v636 = vsel %vm631, %v625, %v626
        %v637 = vsel %vm631, %v624, %v625
        %v638 = vsel %vm631, %v623, %v624
        %v639 = vsel %vm631, %v622, %v623
        %v640 = vsel %vm631, %v621, %v622
        %v641 = vsel %vm631, %v620, %v621
        %v642 = vsel %vm631, %v619, %v620
        %v643 = vsel %vm631, %v618, %v619
        %v644 = vsel %vm631, %v617, %v618
        %v645 = vsel %vm631, %v616, %v617
        %v646 = vsel %vm631, %v615, %v616
        %v647 = vsel %vm631, %v614, %v615
        %v648 = vsel %vm631, %v613, %v614
        %v649 = vsel %vm631, %v612, %v613
        %v650 = vsel %vm631, %v611, %v612
        %v651 = vsel %vm631, %v610, %v611
        %v652 = vsel %vm631, %v609, %v610
        %v653 = vsel %vm631, %v608, %v609
        %v654 = vsel %vm631, %v607, %v608
        %v655 = vsel %vm631, %v606, %v607
        %v656 = vsel %vm631, %v605, %v606
        %v657 = vsel %vm631, %v604, %v605
        %v658 = vsel %vm631, %v603, %v604
        %v659 = vsel %vm631, %v602, %v603
        %v660 = vsel %vm631, %v601, %v602
        %v661 = vsel %vm631, %v600, %v601
        %v662 = vsel %vm631, %v599, %v600
        %v663 = vsel %vm631, %v630, %v599
        %v664 = vsel %vm597, 1, 0
        %v665 = vsel %vm598, 1, 0
        %vm666 = vcmp.eq.s32.totalorder %v664, 1
        %vm667 = vcmp.eq.s32.totalorder %v665, 1
        %v668 = vsel %vm666, -3.4028235e+38, %v662
        %v669 = vsel %vm667, -3.4028235e+38, %v661
        %v670 = vsel %vm666, -3.4028235e+38, %v660
        %v671 = vsel %vm667, -3.4028235e+38, %v659
        %v672 = vsel %vm666, -3.4028235e+38, %v658
        %v673 = vsel %vm667, -3.4028235e+38, %v657
        %v674 = vsel %vm666, -3.4028235e+38, %v656
        %v675 = vsel %vm667, -3.4028235e+38, %v655
        %v676 = vsel %vm666, -3.4028235e+38, %v654
        %v677 = vsel %vm667, -3.4028235e+38, %v653
        %v678 = vsel %vm666, -3.4028235e+38, %v652
        %v679 = vsel %vm667, -3.4028235e+38, %v651
        %v680 = vsel %vm666, -3.4028235e+38, %v650
        %v681 = vsel %vm667, -3.4028235e+38, %v649
        %v682 = vsel %vm666, -3.4028235e+38, %v648
        %v683 = vsel %vm667, -3.4028235e+38, %v647
        %v684 = vsel %vm666, -3.4028235e+38, %v646
        %v685 = vsel %vm667, -3.4028235e+38, %v645
        %v686 = vsel %vm666, -3.4028235e+38, %v644
        %v687 = vsel %vm667, -3.4028235e+38, %v643
        %v688 = vsel %vm666, -3.4028235e+38, %v642
        %v689 = vsel %vm667, -3.4028235e+38, %v641
        %v690 = vsel %vm666, -3.4028235e+38, %v640
        %v691 = vsel %vm667, -3.4028235e+38, %v639
        %v692 = vsel %vm666, -3.4028235e+38, %v638
        %v693 = vsel %vm667, -3.4028235e+38, %v637
        %v694 = vsel %vm666, -3.4028235e+38, %v636
        %v695 = vsel %vm667, -3.4028235e+38, %v635
        %v696 = vsel %vm666, -3.4028235e+38, %v634
        %v697 = vsel %vm667, -3.4028235e+38, %v633
        %v698 = vsel %vm666, -3.4028235e+38, %v632
        %v699 = vsel %vm667, -3.4028235e+38, %v663
        %v700 = vmax.f32 %v565, %v668
        %v701 = vmax.f32 %v566, %v669
        %v702 = vmax.f32 %v567, %v670
        %v703 = vmax.f32 %v568, %v671
        %v704 = vmax.f32 %v569, %v672
        %v705 = vmax.f32 %v570, %v673
        %v706 = vmax.f32 %v571, %v674
        %v707 = vmax.f32 %v572, %v675
        %v708 = vmax.f32 %v573, %v676
        %v709 = vmax.f32 %v574, %v677
        %v710 = vmax.f32 %v575, %v678
        %v711 = vmax.f32 %v576, %v679
        %v712 = vmax.f32 %v577, %v680
        %v713 = vmax.f32 %v578, %v681
        %v714 = vmax.f32 %v579, %v682
        %v715 = vmax.f32 %v580, %v683
        %v716 = vmax.f32 %v581, %v684
        %v717 = vmax.f32 %v582, %v685
        %v718 = vmax.f32 %v583, %v686
        %v719 = vmax.f32 %v584, %v687
        %v720 = vmax.f32 %v585, %v688
        %v721 = vmax.f32 %v586, %v689
        %v722 = vmax.f32 %v587, %v690
        %v723 = vmax.f32 %v588, %v691
        %v724 = vmax.f32 %v589, %v692
        %v725 = vmax.f32 %v590, %v693
        %v726 = vmax.f32 %v591, %v694
        %v727 = vmax.f32 %v592, %v695
        %v728 = vmax.f32 %v593, %v696
        %v729 = vmax.f32 %v594, %v697
        %v730 = vmax.f32 %v595, %v698
        %v731 = vmax.f32 %v596, %v699
        %v732 = vmax.f32 %v365, %v700
        %v733 = vmax.f32 %v368, %v701
        %v734 = vmax.f32 %v373, %v702
        %v735 = vmax.f32 %v376, %v703
        %v736 = vmax.f32 %v381, %v704
        %v737 = vmax.f32 %v384, %v705
        %v738 = vmax.f32 %v389, %v706
        %v739 = vmax.f32 %v392, %v707
        %v740 = vmax.f32 %v397, %v708
        %v741 = vmax.f32 %v400, %v709
        %v742 = vmax.f32 %v405, %v710
        %v743 = vmax.f32 %v408, %v711
        %v744 = vmax.f32 %v413, %v712
        %v745 = vmax.f32 %v416, %v713
        %v746 = vmax.f32 %v421, %v714
        %v747 = vmax.f32 %v424, %v715
        %v748 = vmax.f32 %v429, %v716
        %v749 = vmax.f32 %v432, %v717
        %v750 = vmax.f32 %v437, %v718
        %v751 = vmax.f32 %v440, %v719
        %v752 = vmax.f32 %v445, %v720
        %v753 = vmax.f32 %v448, %v721
        %v754 = vmax.f32 %v453, %v722
        %v755 = vmax.f32 %v456, %v723
        %v756 = vmax.f32 %v461, %v724
        %v757 = vmax.f32 %v464, %v725
        %v758 = vmax.f32 %v469, %v726
        %v759 = vmax.f32 %v472, %v727
        %v760 = vmax.f32 %v477, %v728
        %v761 = vmax.f32 %v480, %v729
        %v762 = vmax.f32 %v485, %v730
        %v763 = vmax.f32 %v488, %v731
        %v764 = vmax.f32 %v734, -3.4028235e+38
        %v765 = vmax.f32 %v735, -3.4028235e+38
        %v766 = vmax.f32 %v738, %v734
        %v767 = vmax.f32 %v739, %v735
        %v768 = vmax.f32 %v742, %v738
        %v769 = vmax.f32 %v743, %v739
        %v770 = vmax.f32 %v746, %v742
        %v771 = vmax.f32 %v747, %v743
        %v772 = vmax.f32 %v750, %v746
        %v773 = vmax.f32 %v751, %v747
        %v774 = vmax.f32 %v754, %v750
        %v775 = vmax.f32 %v755, %v751
        %v776 = vmax.f32 %v758, %v754
        %v777 = vmax.f32 %v759, %v755
        %v778 = vmax.f32 %v762, %v758
        %v779 = vmax.f32 %v763, %v759
        %v780 = vmax.f32 %v732, %v764
        %v781 = vmax.f32 %v733, %v765
        %v782 = vmax.f32 %v736, %v766
        %v783 = vmax.f32 %v737, %v767
        %v784 = vmax.f32 %v740, %v768
        %v785 = vmax.f32 %v741, %v769
        %v786 = vmax.f32 %v744, %v770
        %v787 = vmax.f32 %v745, %v771
        %v788 = vmax.f32 %v748, %v772
        %v789 = vmax.f32 %v749, %v773
        %v790 = vmax.f32 %v752, %v774
        %v791 = vmax.f32 %v753, %v775
        %v792 = vmax.f32 %v756, %v776
        %v793 = vmax.f32 %v757, %v777
        %v794 = vmax.f32 %v760, %v778
        %v795 = vmax.f32 %v761, %v779
        %796 = vst [vmem:[%s137] sm:$0xff] %v780
        %797 = vst [vmem:[%s137 + $0x8] sm:$0xff] %v781
        %798 = vst [vmem:[%s137 + $0x10] sm:$0xff] %v782
        %799 = vst [vmem:[%s137 + $0x18] sm:$0xff] %v783
        %800 = vst [vmem:[%s137 + $0x20] sm:$0xff] %v784
        %801 = vst [vmem:[%s137 + $0x28] sm:$0xff] %v785
        %802 = vst [vmem:[%s137 + $0x30] sm:$0xff] %v786
        %803 = vst [vmem:[%s137 + $0x38] sm:$0xff] %v787
        %804 = vst [vmem:[%s137 + $0x40] sm:$0xff] %v788
        %805 = vst [vmem:[%s137 + $0x48] sm:$0xff] %v789
        %806 = vst [vmem:[%s137 + $0x50] sm:$0xff] %v790
        %807 = vst [vmem:[%s137 + $0x58] sm:$0xff] %v791
        %808 = vst [vmem:[%s137 + $0x60] sm:$0xff] %v792
        %809 = vst [vmem:[%s137 + $0x68] sm:$0xff] %v793
        %810 = vst [vmem:[%s137 + $0x70] sm:$0xff] %v794
        %811 = vst [vmem:[%s137 + $0x78] sm:$0xff] %v795
        %s812 = sand.u32 %s71, 1
        %s813 = scalar_lea.sflag [#allocation3], %s812
        %s814 = sand.u32 %s71, 1
        %s815 = smul.addr %s814, 128
        %s816 = scalar_lea.vmem [#allocation2], %s815
        // Predicated region
        $region29: #{tpu_custom_call.1} parent=27 // pred_check
          %p817 = pneg %p81
        $region30: #{tpu_custom_call.1} parent=27 // pred_check_branch
          %819 = sbr.rel (%p817) target = $region32
        $region31: #{tpu_custom_call.1} parent=27 // pred_region
          %s821 = ssub.s32 2048, 2048
          %822 = vsyncadd %s813, %s821
          %s823 = smul.addr %s16, 16
          %s824 = smul.addr %s823, 128
          %s825 = scalar_lea.hbm %s2, %s824
          %s826 = sshll.u32 %s816, 4
          %s827 = int_to_ptr.vmem [resolvable:$true] %s826
          %832 = dma.vmem_to_hbm [thread:$0]  %s827, 2048, %s825, %s813, 128, 128, 8
        $region32: #{tpu_custom_call.1} parent=27 // pred_fallthru
          _
      $region28: #{tpu_custom_call.1} parent=5 // pred_fallthru
        _
      %p833 = scmp.le.s32.totalorder 2, %s11
      // Predicated region
      $region33: #{tpu_custom_call.1} parent=5 // pred_check
        %p834 = pneg %p833
      $region34: #{tpu_custom_call.1} parent=5 // pred_check_branch
        %836 = sbr.rel (%p834) target = $region36
      $region35: #{tpu_custom_call.1} parent=5 // pred_region
        %s837 = ssub.s32 %s11, 2
        // Predicated region
        $region37: #{tpu_custom_call.1} parent=35 // pred_check
          %p838 = pneg %p87
        $region38: #{tpu_custom_call.1} parent=35 // pred_check_branch
          %840 = sbr.rel (%p838) target = $region40
        $region39: #{tpu_custom_call.1} parent=35 // pred_region
          %s841 = sand.u32 %s72, 1
          %s842 = scalar_lea.sflag [#allocation3], %s841
          %s843 = sand.u32 %s72, 1
          %s844 = smul.addr %s843, 128
          %s845 = scalar_lea.vmem [#allocation2], %s844
          %846 = dma.done %s842, 2048
        $region40: #{tpu_custom_call.1} parent=35 // pred_fallthru
          _
      $region36: #{tpu_custom_call.1} parent=5 // pred_fallthru
        _
    $region6: #{tpu_custom_call.1} parent=1 // loop_footer
      %s15 = sadd.s32 1, %s11
    $region7: #{tpu_custom_call.1} parent=1 // loop_footer_branch
      %10 = sbr.rel target = $region3
    $region8: #{tpu_custom_call.1} parent=1 // loop_exit
      _
    %847 = vsyncpa [#allocation3], 1
    %s848 = scalar_lea.sflag [#allocation3], 1
    %849 = vsyncpa %s848, 1

</llo_original>
